<compile_context>
chip_gen: v6e
topology: v6e:2x2x1
jax: 0.10.0
libtpu: 0.0.40
codegen_flags: <defaults>
</compile_context>

<pallas_src>
import functools

import jax
import jax.numpy as jnp
from jax.experimental import pallas as pl
from jax.experimental.pallas import tpu as pltpu

_LANE = 128
_SUB = 8
_MAX_CE_BLOCK_LANES = 8192          # logits block (1,C,8192): bf16 HBM side ~344 KiB at C=21
_HINGE_BLOCK_BYTES = 2 << 20        # ~2 MiB f32-equivalent per hinge-fallback block
_FUSED_PRED_VMEM_BUDGET = 2 << 20   # resident disc-pred bytes allowed in the fused path
_VMEM_LIMIT_BYTES = 32 * 1024 * 1024

_EXP_DTYPE_CACHE = [None]


def _softmax_exp_dtype():
    """bf16 exp on v6e/v7x (EUP has bf16 there); f32 on v5e/v4 (f32-only EUP)."""
    if _EXP_DTYPE_CACHE[0] is None:
        kind = ""
        try:
            kind = jax.devices()[0].device_kind.lower()
        except Exception:
            pass
        _EXP_DTYPE_CACHE[0] = jnp.bfloat16 if ("v6" in kind or "v7" in kind) else jnp.float32
    return _EXP_DTYPE_CACHE[0]


# ----------------------------------------------------------------------------
# Kernels
# ----------------------------------------------------------------------------
def _fused_loss_kernel(*refs, n_preds, hinge_mode, hw, t_block, ignore_index,
                       needs_lane_mask, exp_dtype):
    """One call: CE sum over the seg head (tiled) + per-scale hinge sums (resident)."""
    x_ref, lab_ref = refs[0], refs[1]
    pred_refs = refs[2:2 + n_preds]
    o_ce_ref = refs[2 + n_preds]
    o_h_refs = refs[3 + n_preds:3 + 2 * n_preds]
    acc_ref = refs[-1]

    n = pl.program_id(0)
    t = pl.program_id(1)
    is_first = (n == 0) & (t == 0)
    is_last = (n == pl.num_programs(0) - 1) & (t == pl.num_programs(1) - 1)

    @pl.when(is_first)
    def _():
        acc_ref[...] = jnp.zeros_like(acc_ref)
        # Hinge sums over all discriminator scales.  The pred blocks are resident
        # (constant index_map -> loaded once), so this runs exactly once per call.
        for s in range(n_preds):
            xp = pred_refs[s][...].astype(jnp.float32)        # (rows_s, w_s)
            if hinge_mode == "d_real":
                v = jnp.minimum(xp - 1.0, 0.0)
            elif hinge_mode == "d_fake":
                v = jnp.minimum(-xp - 1.0, 0.0)
            else:  # 'gen'
                v = xp
            o_h_refs[s][...] = jnp.sum(v, keepdims=True)      # (1, 1)

    # ---- per-pixel cross entropy (ignore_index) on this (n, t) lane tile ----
    logits = x_ref[0].astype(jnp.float32)                     # (C, t_block)
    labels = lab_ref[0]                                       # (1, t_block) int32

    m = jnp.max(logits, axis=0, keepdims=True)                # (1, t_block)
    e = jnp.exp((logits - m).astype(exp_dtype))               # EUP (bf16 on v6e/v7x)
    lse = jnp.log(jnp.sum(e.astype(jnp.float32), axis=0, keepdims=True)) + m
    cls_ids = jax.lax.broadcasted_iota(jnp.int32, logits.shape, 0)
    picked = jnp.sum(jnp.where(cls_ids == labels, logits, 0.0),
                     axis=0, keepdims=True)                   # (1, t_block)

    valid = labels != ignore_index
    if needs_lane_mask:
        pix = t * t_block + jax.lax.broadcasted_iota(jnp.int32, labels.shape, 1)
        valid = valid & (pix < hw)

    # per-lane accumulator (VPU); single cross-lane reduce at the very end.
    acc_ref[...] += jnp.where(valid, lse - picked, 0.0)

    @pl.when(is_last)
    def _():
        o_ce_ref[...] = jnp.sum(acc_ref[...], keepdims=True)


def _hinge_sum_kernel(x_ref, o_ref, acc_ref, *, mode, rows, block_rows,
                      use_acc, needs_mask):
    """Fallback (large preds only): sum(f(x)) over a row-tiled (rows, W) view."""
    i = pl.program_id(0)
    x = x_ref[...].astype(jnp.float32)                        # (block_rows, W)
    if mode == "d_real":
        v = jnp.minimum(x - 1.0, 0.0)
    elif mode == "d_fake":
        v = jnp.minimum(-x - 1.0, 0.0)
    else:  # 'gen'
        v = x

    if needs_mask:  # ragged last block: out-of-bounds rows contribute exactly 0
        row_ids = i * block_rows + jax.lax.broadcasted_iota(jnp.int32, v.shape, 0)
        v = jnp.where(row_ids < rows, v, 0.0)

    if use_acc:
        @pl.when(i == 0)
        def _():
            acc_ref[...] = jnp.zeros_like(acc_ref)

        acc_ref[...] += jnp.sum(v, axis=0, keepdims=True)     # (1, W) partials

        @pl.when(i == pl.num_programs(0) - 1)
        def _():
            o_ref[...] = jnp.sum(acc_ref[...], keepdims=True)
    else:
        o_ref[...] = jnp.sum(v, keepdims=True)


# ----------------------------------------------------------------------------
# Pallas wrappers
# ----------------------------------------------------------------------------
def _fused_mix_loss(seg_logits, labelidx, preds, hinge_mode, *, ignore_index=19):
    """Returns (ce_sum, [hinge_sum_s, ...]) from a single pallas_call."""
    N, C, H, W = seg_logits.shape
    HW = H * W
    logits = labels = None
    logits = seg_logits.reshape(N, C, HW)                     # free contiguous reshape
    labels = labelidx.reshape(N, 1, HW).astype(jnp.int32)

    t_block = HW if HW <= _MAX_CE_BLOCK_LANES else _MAX_CE_BLOCK_LANES
    grid_t = pl.cdiv(HW, t_block)
    needs_lane_mask = (HW % t_block) != 0

    # Discriminator preds ride along as resident full-array blocks (no padding,
    # no per-scale launch).  Host-side reshape to 2-D is free (contiguous).
    preds2 = [p.reshape(-1, p.shape[-1]) for p in preds]
    S = len(preds2)

    in_specs = [
        pl.BlockSpec((1, C, t_block), lambda n, t: (n, 0, t)),
        pl.BlockSpec((1, 1, t_block), lambda n, t: (n, 0, t)),
    ]
    for p in preds2:
        in_specs.append(pl.BlockSpec(p.shape, lambda n, t: (0, 0)))

    out_shapes = [jax.ShapeDtypeStruct((1, 1), jnp.float32) for _ in range(1 + S)]
    out_specs = [pl.BlockSpec((1, 1), lambda n, t: (0, 0)) for _ in range(1 + S)]

    def _run(exp_dtype):
        kernel = functools.partial(
            _fused_loss_kernel, n_preds=S, hinge_mode=hinge_mode, hw=HW,
            t_block=t_block, ignore_index=ignore_index,
            needs_lane_mask=needs_lane_mask, exp_dtype=exp_dtype)
        return pl.pallas_call(
            kernel,
            out_shape=out_shapes,
            grid_spec=pltpu.PrefetchScalarGridSpec(
                num_scalar_prefetch=0,
                grid=(N, grid_t),
                in_specs=in_specs,
                out_specs=out_specs,
                scratch_shapes=[pltpu.VMEM((1, t_block), jnp.float32)],
            ),
            compiler_params=pltpu.CompilerParams(
                dimension_semantics=("arbitrary", "arbitrary"),
                vmem_limit_bytes=_VMEM_LIMIT_BYTES),
        )(logits, labels, *preds2)

    exp_dtype = _softmax_exp_dtype()
    if exp_dtype == jnp.float32:
        outs = _run(jnp.float32)
    else:
        try:
            outs = _run(exp_dtype)
        except Exception:
            # TODO(synk): bf16 EUP path failed to lower on this target; use f32.
            _EXP_DTYPE_CACHE[0] = jnp.float32
            outs = _run(jnp.float32)

    ce_sum = outs[0][0, 0]
    hinge_sums = [o[0, 0] for o in outs[1:]]
    return ce_sum, hinge_sums


def seg_ce_mean(logits_nchw, labelidx_nhw, *, ignore_index=19):
    """mean over N*H*W of cross_entropy(logits, labelidx, ignore_index)."""
    N, C, H, W = logits_nchw.shape
    ce_sum, _ = _fused_mix_loss(logits_nchw, labelidx_nhw, [], "gen",
                                ignore_index=ignore_index)
    # Matches torch: reduction='none' then .mean() over all N*H*W pixels
    # (ignored pixels contribute 0 to the numerator but count in the denominator).
    return ce_sum / (N * H * W)


def _hinge_sum(pred, mode):
    """Fallback tiled reduction for very large preds: no host padding / concat."""
    x2 = pred.reshape(-1, pred.shape[-1])                     # free contiguous reshape
    rows, w = x2.shape
    padded_w = -(-w // _LANE) * _LANE
    budget_rows = max(_SUB, (_HINGE_BLOCK_BYTES // (padded_w * 4)) // _SUB * _SUB)
    block_rows = rows if rows <= budget_rows else budget_rows
    num_blocks = pl.cdiv(rows, block_rows)
    use_acc = num_blocks > 1
    needs_mask = (rows % block_rows) != 0

    s = pl.pallas_call(
        functools.partial(_hinge_sum_kernel, mode=mode, rows=rows,
                          block_rows=block_rows, use_acc=use_acc,
                          needs_mask=needs_mask),
        out_shape=jax.ShapeDtypeStruct((1, 1), jnp.float32),
        grid_spec=pltpu.PrefetchScalarGridSpec(
            num_scalar_prefetch=0,
            grid=(num_blocks,),
            in_specs=[pl.BlockSpec((block_rows, w), lambda i: (i, 0))],
            out_specs=pl.BlockSpec((1, 1), lambda i: (0, 0)),
            scratch_shapes=[pltpu.VMEM((1, w), jnp.float32)],
        ),
        compiler_params=pltpu.CompilerParams(
            dimension_semantics=("arbitrary",),
            vmem_limit_bytes=_VMEM_LIMIT_BYTES),
    )(x2)
    return s[0, 0], pred.size


def hinge_loss(pred, target_is_real, for_discriminator):
    """GANLoss.loss for gan_mode='hinge' (scalar)."""
    if for_discriminator:
        mode = "d_real" if target_is_real else "d_fake"
    else:
        assert target_is_real, "The generator's hinge loss must be aiming for real"
        mode = "gen"
    s, total = _hinge_sum(pred, mode)
    return -s / total


def _pred_resident_bytes(p):
    rows = p.size // p.shape[-1]
    w = p.shape[-1]
    r_p = -(-rows // _SUB) * _SUB
    c_p = -(-w // _LANE) * _LANE
    return r_p * c_p * jnp.dtype(p.dtype).itemsize


# ----------------------------------------------------------------------------
# Glue (plain JAX): nearest-neighbor resize matching F.interpolate(mode='nearest')
# ----------------------------------------------------------------------------
def nearest_resize_nchw(x, out_h, out_w):
    n, c, in_h, in_w = x.shape
    hi = (jnp.arange(out_h) * in_h // out_h).astype(jnp.int32)
    wi = (jnp.arange(out_w) * in_w // out_w).astype(jnp.int32)
    return x[:, :, hi[:, None], wi[None, :]]


# ----------------------------------------------------------------------------
# MixGANLoss (forward only)
# ----------------------------------------------------------------------------
class MixGANLossPallas:
    def __init__(self, ganmode1, weight=0.5, ganmode2="mask", segclassnum=21, fuse=True):
        self.gan_mode = ganmode1[4:]
        if self.gan_mode != "hinge":
            # TODO(synk): 'ls' / 'original' / 'w' GAN modes not implemented here.
            raise NotImplementedError("only hinge gan_mode implemented")
        assert 0.0 <= weight <= 1.0
        self.seggantype = ganmode2
        # NOTE: faithful to torch — SegGANLoss.forward drops arguments so the inner
        # mask is None and `weight` never modifies the per-pixel weight; the final
        # return is the unweighted loss1 + loss2, exactly as in MixGANLoss.forward.
        self.weight = weight
        self.segclassnum = segclassnum
        self.fuse = fuse

    def __call__(self, x, target_is_real, for_discriminator, label, mask):
        assert isinstance(x, list)

        # ---- SegGANLoss part on x[-1][0] ----------------------------------
        seg_pred = x[-1][0]
        N, C, H, W = seg_pred.shape
        # `mask` supplies the labels (argument-drop quirk); inner mask is None.
        lab = nearest_resize_nchw(mask, H, W).astype(jnp.int32)
        lab = jnp.squeeze(lab, axis=1)  # (N, H, W); axis=1 keeps batch dim when N==1
        if self.seggantype == "mask":
            labelidx = lab if target_is_real else lab + 2
        else:  # 'seg'
            labelidx = lab if target_is_real else jnp.full_like(lab, self.segclassnum - 1)
        # NOTE: with 'mask' + fake, lab+2 must stay < C (torch would error otherwise).

        if for_discriminator:
            hinge_mode = "d_real" if target_is_real else "d_fake"
        else:
            assert target_is_real, "The generator's hinge loss must be aiming for real"
            hinge_mode = "gen"

        # ---- GANLoss (hinge) part on x[:-1] -------------------------------
        preds = [p[-1] if isinstance(p, list) else p for p in x[: len(x) - 1]]
        pred_bytes = sum(_pred_resident_bytes(p) for p in preds)

        if self.fuse and pred_bytes <= _FUSED_PRED_VMEM_BUDGET:
            # Single pallas_call: CE sum + all per-scale hinge sums.
            ce_sum, hinge_sums = _fused_mix_loss(seg_pred, labelidx, preds, hinge_mode)
            loss1 = ce_sum / (N * H * W)
            loss2 = jnp.zeros((), jnp.float32)
            for s, p in zip(hinge_sums, preds):
                loss2 = loss2 + (-s / p.size)          # -mean per scale
            loss2 = loss2 / len(preds)
        else:
            # Fallback for huge discriminator maps: tiled per-scale hinge + tiled CE.
            loss1 = seg_ce_mean(seg_pred, labelidx)
            loss2 = jnp.zeros((), jnp.float32)
            for p in preds:
                loss2 = loss2 + hinge_loss(p, target_is_real, for_discriminator)
            loss2 = loss2 / len(preds)

        return jnp.reshape(loss1 + loss2, (1,))  # torch returns shape (1,)


# ----------------------------------------------------------------------------
# Pure-JAX references (for correctness checks)
# ----------------------------------------------------------------------------
def ref_hinge(p, target_is_real, for_discriminator):
    p = p.astype(jnp.float32)
    if for_discriminator:
        if target_is_real:
            return -jnp.mean(jnp.minimum(p - 1.0, 0.0))
        return -jnp.mean(jnp.minimum(-p - 1.0, 0.0))
    return -jnp.mean(p)


def ref_seg_ce_mean(seg, labelidx, ignore_index=19):
    seg = seg.astype(jnp.float32)
    C = seg.shape[1]
    logp = jax.nn.log_softmax(seg, axis=1)
    onehot = jax.nn.one_hot(labelidx, C, axis=1, dtype=jnp.float32)
    ce = -jnp.sum(logp * onehot, axis=1)
    ce = jnp.where(labelidx == ignore_index, 0.0, ce)
    return jnp.mean(ce)


def ref_mix_gan_loss(x, target_is_real, for_discriminator, label, mask,
                     seggantype="mask", segclassnum=21):
    seg = x[-1][0]
    N, C, H, W = seg.shape
    lab = jnp.squeeze(nearest_resize_nchw(mask, H, W).astype(jnp.int32), axis=1)
    if seggantype == "mask":
        labelidx = lab if target_is_real else lab + 2
    else:
        labelidx = lab if target_is_real else jnp.full_like(lab, segclassnum - 1)
    loss1 = ref_seg_ce_mean(seg, labelidx)

    preds = [p[-1] if isinstance(p, list) else p for p in x[:-1]]
    loss2 = jnp.zeros((1,), jnp.float32)
    for p in preds:
        loss2 = loss2 + jnp.reshape(ref_hinge(p, target_is_real, for_discriminator), (1,))
    loss2 = loss2 / len(preds)
    return loss1 + loss2


# ----------------------------------------------------------------------------
# Demo
# ----------------------------------------------------------------------------
if __name__ == "__main__":
    key = jax.random.PRNGKey(0)
    k1, k2, k3, k4, k5, k6, k7, k8 = jax.random.split(key, 8)

    N = 2
    # multiscale discriminator outputs (each a [features, prediction] list)
    f1 = jax.random.normal(k3, (N, 4, 16, 16), jnp.float32)   # intermediate features (unused)
    d1 = jax.random.normal(k1, (N, 1, 16, 16), jnp.float32)   # disc prediction, scale 0
    d2 = jax.random.normal(k2, (N, 1, 8, 8), jnp.float32)     # disc prediction, scale 1
    # seg head output (last list element, index [0])
    seg = jax.random.normal(k4, (N, 8, 16, 16), jnp.float32)  # 8 "classes"
    # mask (binary) and label (unused by the torch code path)
    mask = (jax.random.uniform(k5, (N, 1, 16, 16)) > 0.5).astype(jnp.float32)
    label = jnp.zeros((N, 1, 16, 16), jnp.float32)

    x = [[f1, d1], [f1, d2], [seg, d1]]
    loss_fn = MixGANLossPallas("mix_hinge", weight=0.5, ganmode2="mask")

    # Full fused forward, a few flag combinations (disc/real, disc/fake, gen/real).
    # Tolerances cover the (intentional) bf16-exp softmax path on v6e/v7x.
    for tir, fdisc in [(True, True), (False, True), (True, False)]:
        out = jax.block_until_ready(loss_fn(x, tir, fdisc, label, mask))
        ref = ref_mix_gan_loss(x, tir, fdisc, label, mask)
        assert out.shape == (1,), out.shape
        assert jnp.allclose(out, ref, rtol=5e-3, atol=5e-3), (tir, fdisc, out, ref)

    # 'seg' mode (fake label = segclassnum-1) through the fused path.
    loss_fn_seg = MixGANLossPallas("mix_hinge", ganmode2="seg", segclassnum=8)
    out = jax.block_until_ready(loss_fn_seg(x, False, True, label, mask))
    ref = ref_mix_gan_loss(x, False, True, label, mask, seggantype="seg", segclassnum=8)
    assert jnp.allclose(out, ref, rtol=5e-3, atol=5e-3), (out, ref)

    # Fallback (unfused) path: tiled per-scale hinge + tiled CE.
    loss_fn_uf = MixGANLossPallas("mix_hinge", fuse=False)
    out = jax.block_until_ready(loss_fn_uf(x, True, True, label, mask))
    ref = ref_mix_gan_loss(x, True, True, label, mask)
    assert jnp.allclose(out, ref, rtol=5e-3, atol=5e-3), (out, ref)

    # Standalone checks: multi-block row-tiled hinge with ragged rows and a
    # non-128-multiple lane width, fed natively in bf16 (no host padding).
    big_pred = jax.random.normal(k6, (1, 2, 2050, 136), jnp.bfloat16)  # -> (4100, 136)
    hl = jax.block_until_ready(hinge_loss(big_pred, True, True))
    assert jnp.allclose(hl, ref_hinge(big_pred, True, True), rtol=1e-3, atol=1e-3)

    # Standalone CE: HW=9216 > 8192 -> 2 lane tiles + ragged-lane masking, bf16 logits.
    big_seg = jax.random.normal(k7, (2, 21, 96, 96), jnp.bfloat16)
    big_lab = jax.random.randint(k8, (2, 96, 96), 0, 21)       # includes ignore_index=19
    ce = jax.block_until_ready(seg_ce_mean(big_seg, big_lab))
    assert jnp.allclose(ce, ref_seg_ce_mean(big_seg, big_lab), rtol=1e-2, atol=1e-2)

    print("KERNEL_OK")
</pallas_src>

<mosaic_0001>
module attributes {stable_mosaic.version = 11 : i64} {
  func.func @_fused_loss_kernel(%arg0: i32, %arg1: i32, %arg2: memref<1x8x256xf32, #tpu.memory_space<vmem>>, %arg3: memref<1x1x256xi32, #tpu.memory_space<vmem>>, %arg4: memref<32x16xf32, #tpu.memory_space<vmem>>, %arg5: memref<16x8xf32, #tpu.memory_space<vmem>>, %arg6: memref<1x1xf32, #tpu.memory_space<vmem>>, %arg7: memref<1x1xf32, #tpu.memory_space<vmem>>, %arg8: memref<1x1xf32, #tpu.memory_space<vmem>>, %arg9: memref<1x256xf32, #tpu.memory_space<vmem>>) attributes {dimension_semantics = [#tpu.dimension_semantics<arbitrary>, #tpu.dimension_semantics<arbitrary>], iteration_bounds = array<i64: 2, 1>, scalar_prefetch = 0 : i64, scratch_operands = 1 : i64, tpu.core_type = #tpu.core_type<tc>, window_params = [{transform_indices = @transform_0, window_bounds = array<i64: 1, 8, 256>}, {transform_indices = @transform_1, window_bounds = array<i64: 1, 1, 256>}, {pipeline_mode = #tpu.pipeline_mode<synchronous>, transform_indices = @transform_2, window_bounds = array<i64: 32, 16>}, {pipeline_mode = #tpu.pipeline_mode<synchronous>, transform_indices = @transform_3, window_bounds = array<i64: 16, 8>}, {pipeline_mode = #tpu.pipeline_mode<synchronous>, transform_indices = @transform_4, window_bounds = array<i64: 1, 1>}, {pipeline_mode = #tpu.pipeline_mode<synchronous>, transform_indices = @transform_5, window_bounds = array<i64: 1, 1>}, {pipeline_mode = #tpu.pipeline_mode<synchronous>, transform_indices = @transform_6, window_bounds = array<i64: 1, 1>}]} {
    %c0_i32 = arith.constant 0 : i32
    %0 = arith.cmpi eq, %arg0, %c0_i32 : i32
    %c0_i32_0 = arith.constant 0 : i32
    %1 = arith.cmpi eq, %arg1, %c0_i32_0 : i32
    %2 = arith.andi %0, %1 : i1
    %c1_i32 = arith.constant 1 : i32
    %3 = arith.cmpi eq, %arg0, %c1_i32 : i32
    %c0_i32_1 = arith.constant 0 : i32
    %4 = arith.cmpi eq, %arg1, %c0_i32_1 : i32
    %5 = arith.andi %3, %4 : i1
    %6 = arith.extui %2 : i1 to i32
    %c0_i32_2 = arith.constant 0 : i32
    %7 = arith.cmpi ne, %6, %c0_i32_2 : i32
    scf.if %7 {
      %cst_17 = arith.constant 0.000000e+00 : f32
      %38 = vector.broadcast %cst_17 : f32 to vector<1x256xf32>
      %c0_18 = arith.constant 0 : index
      %c0_19 = arith.constant 0 : index
      %39 = vector.load %arg9[%c0_18, %c0_19] : memref<1x256xf32, #tpu.memory_space<vmem>>, vector<1x256xf32>
      tpu.vector_store %arg9[%c0_18, %c0_19], %38 {strides = array<i32>} : memref<1x256xf32, #tpu.memory_space<vmem>>, vector<1x256xf32>,
      %c0_20 = arith.constant 0 : index
      %c0_21 = arith.constant 0 : index
      %40 = vector.load %arg4[%c0_20, %c0_21] : memref<32x16xf32, #tpu.memory_space<vmem>>, vector<32x16xf32>
      %cst_22 = arith.constant 1.000000e+00 : f32
      %41 = vector.broadcast %cst_22 : f32 to vector<32x16xf32>
      %42 = arith.subf %40, %41 : vector<32x16xf32>
      %cst_23 = arith.constant 0.000000e+00 : f32
      %43 = vector.broadcast %cst_23 : f32 to vector<32x16xf32>
      %44 = arith.minimumf %42, %43 : vector<32x16xf32>
      %45 = vector.shape_cast %44 : vector<32x16xf32> to vector<1x32x16xf32>
      %cst_24 = arith.constant dense<0.000000e+00> : vector<1xf32>
      %46 = vector.multi_reduction <add>, %45, %cst_24 [1, 2] : vector<1x32x16xf32> to vector<1xf32>
      %47 = vector.shape_cast %46 : vector<1xf32> to vector<1x1x1xf32>
      %48 = vector.extract %47[0, 0, 0] : f32 from vector<1x1x1xf32>
      %49 = vector.broadcast %48 : f32 to vector<1x1xf32>
      %c0_25 = arith.constant 0 : index
      %c0_26 = arith.constant 0 : index
      %50 = vector.load %arg7[%c0_25, %c0_26] : memref<1x1xf32, #tpu.memory_space<vmem>>, vector<1x1xf32>
      tpu.vector_store %arg7[%c0_25, %c0_26], %49 {strides = array<i32>} : memref<1x1xf32, #tpu.memory_space<vmem>>, vector<1x1xf32>,
      %c0_27 = arith.constant 0 : index
      %c0_28 = arith.constant 0 : index
      %51 = vector.load %arg5[%c0_27, %c0_28] : memref<16x8xf32, #tpu.memory_space<vmem>>, vector<16x8xf32>
      %cst_29 = arith.constant 1.000000e+00 : f32
      %52 = vector.broadcast %cst_29 : f32 to vector<16x8xf32>
      %53 = arith.subf %51, %52 : vector<16x8xf32>
      %cst_30 = arith.constant 0.000000e+00 : f32
      %54 = vector.broadcast %cst_30 : f32 to vector<16x8xf32>
      %55 = arith.minimumf %53, %54 : vector<16x8xf32>
      %56 = vector.shape_cast %55 : vector<16x8xf32> to vector<1x16x8xf32>
      %cst_31 = arith.constant dense<0.000000e+00> : vector<1xf32>
      %57 = vector.multi_reduction <add>, %56, %cst_31 [1, 2] : vector<1x16x8xf32> to vector<1xf32>
      %58 = vector.shape_cast %57 : vector<1xf32> to vector<1x1x1xf32>
      %59 = vector.extract %58[0, 0, 0] : f32 from vector<1x1x1xf32>
      %60 = vector.broadcast %59 : f32 to vector<1x1xf32>
      %c0_32 = arith.constant 0 : index
      %c0_33 = arith.constant 0 : index
      %61 = vector.load %arg8[%c0_32, %c0_33] : memref<1x1xf32, #tpu.memory_space<vmem>>, vector<1x1xf32>
      tpu.vector_store %arg8[%c0_32, %c0_33], %60 {strides = array<i32>} : memref<1x1xf32, #tpu.memory_space<vmem>>, vector<1x1xf32>,
    } else {
    }
    %c0 = arith.constant 0 : index
    %c0_3 = arith.constant 0 : index
    %c0_4 = arith.constant 0 : index
    %8 = vector.load %arg2[%c0, %c0_3, %c0_4] : memref<1x8x256xf32, #tpu.memory_space<vmem>>, vector<1x8x256xf32>
    %9 = vector.shape_cast %8 : vector<1x8x256xf32> to vector<8x256xf32>
    %c0_5 = arith.constant 0 : index
    %c0_6 = arith.constant 0 : index
    %c0_7 = arith.constant 0 : index
    %10 = vector.load %arg3[%c0_5, %c0_6, %c0_7] : memref<1x1x256xi32, #tpu.memory_space<vmem>>, vector<1x1x256xi32>
    %11 = vector.shape_cast %10 : vector<1x1x256xi32> to vector<1x256xi32>
    %cst = arith.constant dense<0xFF800000> : vector<256xf32>
    %12 = vector.multi_reduction <maximumf>, %9, %cst [0] : vector<8x256xf32> to vector<256xf32>
    %13 = vector.shape_cast %12 : vector<256xf32> to vector<1x256xf32>
    %14 = vector.broadcast %13 : vector<1x256xf32> to vector<8x256xf32>
    %15 = arith.subf %9, %14 : vector<8x256xf32>
    %16 = math.exp %15 : vector<8x256xf32>
    %cst_8 = arith.constant dense<0.000000e+00> : vector<256xf32>
    %17 = vector.multi_reduction <add>, %16, %cst_8 [0] : vector<8x256xf32> to vector<256xf32>
    %18 = vector.shape_cast %17 : vector<256xf32> to vector<1x256xf32>
    %19 = math.log %18 : vector<1x256xf32>
    %20 = arith.addf %19, %13 : vector<1x256xf32>
    %21 = tpu.iota {dimensions = array<i32: 0>} : vector<8x256xi32>
    %22 = vector.broadcast %11 : vector<1x256xi32> to vector<8x256xi32>
    %23 = arith.cmpi eq, %21, %22 : vector<8x256xi32>
    %cst_9 = arith.constant 0.000000e+00 : f32
    %24 = vector.broadcast %cst_9 : f32 to vector<8x256xf32>
    %25 = arith.select %23, %9, %24 : vector<8x256xi1>, vector<8x256xf32>
    %cst_10 = arith.constant dense<0.000000e+00> : vector<256xf32>
    %26 = vector.multi_reduction <add>, %25, %cst_10 [0] : vector<8x256xf32> to vector<256xf32>
    %27 = vector.shape_cast %26 : vector<256xf32> to vector<1x256xf32>
    %c19_i32 = arith.constant 19 : i32
    %28 = vector.broadcast %c19_i32 : i32 to vector<1x256xi32>
    %29 = arith.cmpi ne, %11, %28 : vector<1x256xi32>
    %c0_11 = arith.constant 0 : index
    %c0_12 = arith.constant 0 : index
    %30 = vector.load %arg9[%c0_11, %c0_12] : memref<1x256xf32, #tpu.memory_space<vmem>>, vector<1x256xf32>
    %31 = arith.subf %20, %27 : vector<1x256xf32>
    %cst_13 = arith.constant 0.000000e+00 : f32
    %32 = vector.broadcast %cst_13 : f32 to vector<1x256xf32>
    %33 = arith.select %29, %31, %32 : vector<1x256xi1>, vector<1x256xf32>
    %34 = arith.addf %30, %33 : vector<1x256xf32>
    %c0_14 = arith.constant 0 : index
    %c0_15 = arith.constant 0 : index
    %35 = vector.load %arg9[%c0_14, %c0_15] : memref<1x256xf32, #tpu.memory_space<vmem>>, vector<1x256xf32>
    tpu.vector_store %arg9[%c0_14, %c0_15], %34 {strides = array<i32>} : memref<1x256xf32, #tpu.memory_space<vmem>>, vector<1x256xf32>,
    %36 = arith.extui %5 : i1 to i32
    %c0_i32_16 = arith.constant 0 : i32
    %37 = arith.cmpi ne, %36, %c0_i32_16 : i32
    scf.if %37 {
      %c0_17 = arith.constant 0 : index
      %c0_18 = arith.constant 0 : index
      %38 = vector.load %arg9[%c0_17, %c0_18] : memref<1x256xf32, #tpu.memory_space<vmem>>, vector<1x256xf32>
      %39 = vector.shape_cast %38 : vector<1x256xf32> to vector<1x1x256xf32>
      %cst_19 = arith.constant dense<0.000000e+00> : vector<1xf32>
      %40 = vector.multi_reduction <add>, %39, %cst_19 [1, 2] : vector<1x1x256xf32> to vector<1xf32>
      %41 = vector.shape_cast %40 : vector<1xf32> to vector<1x1x1xf32>
      %42 = vector.extract %41[0, 0, 0] : f32 from vector<1x1x1xf32>
      %43 = vector.broadcast %42 : f32 to vector<1x1xf32>
      %c0_20 = arith.constant 0 : index
      %c0_21 = arith.constant 0 : index
      %44 = vector.load %arg6[%c0_20, %c0_21] : memref<1x1xf32, #tpu.memory_space<vmem>>, vector<1x1xf32>
      tpu.vector_store %arg6[%c0_20, %c0_21], %43 {strides = array<i32>} : memref<1x1xf32, #tpu.memory_space<vmem>>, vector<1x1xf32>,
    } else {
    }
    return
  }
  func.func @transform_0(%arg0: i32, %arg1: i32) -> (i32, i32, i32) {
    %c0_i32 = arith.constant 0 : i32
    %c0_i32_0 = arith.constant 0 : i32
    return %arg0, %c0_i32, %arg1 : i32, i32, i32
  }
  func.func @transform_1(%arg0: i32, %arg1: i32) -> (i32, i32, i32) {
    %c0_i32 = arith.constant 0 : i32
    %c0_i32_0 = arith.constant 0 : i32
    return %arg0, %c0_i32, %arg1 : i32, i32, i32
  }
  func.func @transform_2(%arg0: i32, %arg1: i32) -> (i32, i32) {
    %c0_i32 = arith.constant 0 : i32
    %c0_i32_0 = arith.constant 0 : i32
    %c0_i32_1 = arith.constant 0 : i32
    return %c0_i32, %c0_i32_0 : i32, i32
  }
  func.func @transform_3(%arg0: i32, %arg1: i32) -> (i32, i32) {
    %c0_i32 = arith.constant 0 : i32
    %c0_i32_0 = arith.constant 0 : i32
    %c0_i32_1 = arith.constant 0 : i32
    return %c0_i32, %c0_i32_0 : i32, i32
  }
  func.func @transform_4(%arg0: i32, %arg1: i32) -> (i32, i32) {
    %c0_i32 = arith.constant 0 : i32
    %c0_i32_0 = arith.constant 0 : i32
    %c0_i32_1 = arith.constant 0 : i32
    return %c0_i32, %c0_i32_0 : i32, i32
  }
  func.func @transform_5(%arg0: i32, %arg1: i32) -> (i32, i32) {
    %c0_i32 = arith.constant 0 : i32
    %c0_i32_0 = arith.constant 0 : i32
    %c0_i32_1 = arith.constant 0 : i32
    return %c0_i32, %c0_i32_0 : i32, i32
  }
  func.func @transform_6(%arg0: i32, %arg1: i32) -> (i32, i32) {
    %c0_i32 = arith.constant 0 : i32
    %c0_i32_0 = arith.constant 0 : i32
    %c0_i32_1 = arith.constant 0 : i32
    return %c0_i32, %c0_i32_0 : i32, i32
  }
}

</mosaic_0001>

<llo_original>
// kernel: tpu_custom_call.1
$region0: #{tpu_custom_call.1}
  #allocation0 [shape = 'u32[]', space=smem, size = 0x4, offset = 0x4, fixed_abs, tag = 'smem constant byte address 0x4 - core index']
  #allocation1 [shape = 'u32[144,128]{1,0:T(1,128)}', space=vmem, size = 0x12000, scoped, tag = 'internal scratch']
  #allocation2 [shape = 'f32[1,256]{1,0:T(1,128)}', space=vmem, size = 0x400, scoped, tag = 'scratch operand']
  %s0 = inlined_call_operand.vmem [shape: f32[2,8,256], index: 0, kind: input, shape index: {}]
  %s1 = inlined_call_operand.vmem [shape: s32[2,1,256], index: 1, kind: input, shape index: {}]
  %s2 = inlined_call_operand.vmem [shape: f32[32,16], index: 2, kind: input, shape index: {}]
  %s3 = inlined_call_operand.vmem [shape: f32[16,8], index: 3, kind: input, shape index: {}]
  %s4 = inlined_call_operand.hbm [shape: f32[1,1], index: 4, kind: output, shape index: {0}]
  %s5 = inlined_call_operand.hbm [shape: f32[1,1], index: 5, kind: output, shape index: {1}]
  %s6 = inlined_call_operand.hbm [shape: f32[1,1], index: 6, kind: output, shape index: {2}]
  %7 = xla_tuple %s4, %s5, %s6
  %s8 = sld [smem:[#allocation0]]
  $region73: #{tpu_custom_call.1} parent=0
    _
  %s10 = ssub.s32 1, %s8
  %s11 = scalar_select 0, %s10, %s8
  $region1: #{tpu_custom_call.1} parent=0
    #allocation3 [shape = 'u8[512]{0}', space=vmem, size = 0x400, scoped, tag = 'output window, operand 0, single buffered']
    #allocation4 [shape = 's32[2]{0}', space=sflag, size = 0x8, scoped, tag = 'scoped memory for tpu_custom_call.1']
    #allocation5 [shape = 'u8[512]{0}', space=vmem, size = 0x400, scoped, tag = 'output window, operand 1, single buffered']
    #allocation6 [shape = 's32[1]{0}', space=sflag, size = 0x4, scoped, tag = 'scoped memory for tpu_custom_call.1']
    #allocation7 [shape = 'u8[512]{0}', space=vmem, size = 0x400, scoped, tag = 'output window, operand 2, single buffered']
    %12 = vsyncpa [#allocation4], 0
    %13 = vsyncpa [#allocation6], 0
    loop: start=0, step=1, limit=4
    $region2: #{tpu_custom_call.1} parent=1 // loop_pre_header
      _
    $region3: #{tpu_custom_call.1} parent=1 // loop_header
      %s15 = sphi 0, %s19
      %p16 = scmp.ge.s32.totalorder %s15, 4
      %s22 = sphi 0, %s34
      %s23 = sphi 0, %s30
      %s24 = sphi 0, %s22
      %s25 = sphi 0, %s23
      %s26 = sphi 0, %s24
      %s27 = sphi 0, %s25
      %s39 = sphi 0, %s41
      %s42 = sphi 0, %s39
      %s43 = sphi 0, %s42
      %s59 = sphi 0, %s43
      %s67 = sphi 0, %s69
      %s70 = sphi 0, %s67
      %s71 = sphi 0, %s70
      %s87 = sphi 0, %s71
      %s91 = sphi 0, %s91
      %s93 = sphi 0, %s91
      %s94 = sphi 0, %s93
      %s108 = sphi 0, %s94
      %s112 = sphi 0, %s112
      %s114 = sphi 0, %s112
      %s115 = sphi 0, %s114
      %s129 = sphi 0, %s115
      %s133 = sphi 0, %s133
      %s135 = sphi 0, %s133
      %s136 = sphi 0, %s135
      %s150 = sphi 0, %s136
      %s154 = sphi 0, %s154
      %s156 = sphi 0, %s154
      %s157 = sphi 0, %s156
      %s171 = sphi 0, %s157
      %s175 = sphi 0, %s175
      %s177 = sphi 0, %s175
      %s178 = sphi 0, %s177
      %s192 = sphi 0, %s178
    $region4: #{tpu_custom_call.1} parent=1 // loop_header_branch
      %18 = sbr.rel (%p16) target = $region8
    $region5: #{tpu_custom_call.1} parent=1 // loop_body
      %s20 = ssub.s32 %s15, 1
      %s21 = ssub.s32 %s15, 2
      %s28 = sadd.s32 1, %s23
      %p29 = scmp.ge.s32.totalorder %s28, 1
      %s30 = scalar_select %p29, 0, %s28
      %s31 = sadd.s32 1, %s22
      %s32 = scalar_select %p29, %s31, %s22
      %p33 = scmp.ge.s32.totalorder %s32, 2
      %s34 = scalar_select %p33, 0, %s32
      %s35 = ssub.s32 %s22, %s34
      %s36 = ssub.s32 %s23, %s30
      %s37 = sor.u32 %s35, %s36
      %p38 = scmp.eq.s32.totalorder %s37, 0
      %s40 = sadd.s32 %s39, 1
      %s41 = scalar_select %p38, %s39, %s40
      %p44 = pneg %p38
      %p45 = scmp.eq.s32.totalorder %s15, 1
      %p46 = por %p44, %p45
      %p47 = scmp.ne.s32.totalorder %s39, %s42
      %p48 = scmp.eq.s32.totalorder %s15, 0
      %p49 = por %p47, %p48
      %p50 = scmp.ne.s32.totalorder %s39, %s42
      %p51 = scmp.eq.s32.totalorder %s20, 1
      %p52 = por %p50, %p51
      %p53 = scmp.ne.s32.totalorder %s42, %s43
      %p54 = scmp.eq.s32.totalorder %s20, 0
      %p55 = por %p53, %p54
      %p56 = scmp.ne.s32.totalorder %s42, %s43
      %p57 = scmp.eq.s32.totalorder %s21, 1
      %p58 = por %p56, %p57
      %p60 = scmp.ne.s32.totalorder %s43, %s59
      %p61 = scmp.eq.s32.totalorder %s21, 0
      %p62 = por %p60, %p61
      %s63 = ssub.s32 %s22, %s34
      %s64 = ssub.s32 %s23, %s30
      %s65 = sor.u32 %s63, %s64
      %p66 = scmp.eq.s32.totalorder %s65, 0
      %s68 = sadd.s32 %s67, 1
      %s69 = scalar_select %p66, %s67, %s68
      %p72 = pneg %p66
      %p73 = scmp.eq.s32.totalorder %s15, 1
      %p74 = por %p72, %p73
      %p75 = scmp.ne.s32.totalorder %s67, %s70
      %p76 = scmp.eq.s32.totalorder %s15, 0
      %p77 = por %p75, %p76
      %p78 = scmp.ne.s32.totalorder %s67, %s70
      %p79 = scmp.eq.s32.totalorder %s20, 1
      %p80 = por %p78, %p79
      %p81 = scmp.ne.s32.totalorder %s70, %s71
      %p82 = scmp.eq.s32.totalorder %s20, 0
      %p83 = por %p81, %p82
      %p84 = scmp.ne.s32.totalorder %s70, %s71
      %p85 = scmp.eq.s32.totalorder %s21, 1
      %p86 = por %p84, %p85
      %p88 = scmp.ne.s32.totalorder %s71, %s87
      %p89 = scmp.eq.s32.totalorder %s21, 0
      %p90 = por %p88, %p89
      %s92 = sadd.s32 %s91, 1
      %p95 = scmp.eq.s32.totalorder %s15, 1
      %p96 = scmp.ne.s32.totalorder %s91, %s93
      %p97 = scmp.eq.s32.totalorder %s15, 0
      %p98 = por %p96, %p97
      %p99 = scmp.ne.s32.totalorder %s91, %s93
      %p100 = scmp.eq.s32.totalorder %s20, 1
      %p101 = por %p99, %p100
      %p102 = scmp.ne.s32.totalorder %s93, %s94
      %p103 = scmp.eq.s32.totalorder %s20, 0
      %p104 = por %p102, %p103
      %p105 = scmp.ne.s32.totalorder %s93, %s94
      %p106 = scmp.eq.s32.totalorder %s21, 1
      %p107 = por %p105, %p106
      %p109 = scmp.ne.s32.totalorder %s94, %s108
      %p110 = scmp.eq.s32.totalorder %s21, 0
      %p111 = por %p109, %p110
      %s113 = sadd.s32 %s112, 1
      %p116 = scmp.eq.s32.totalorder %s15, 1
      %p117 = scmp.ne.s32.totalorder %s112, %s114
      %p118 = scmp.eq.s32.totalorder %s15, 0
      %p119 = por %p117, %p118
      %p120 = scmp.ne.s32.totalorder %s112, %s114
      %p121 = scmp.eq.s32.totalorder %s20, 1
      %p122 = por %p120, %p121
      %p123 = scmp.ne.s32.totalorder %s114, %s115
      %p124 = scmp.eq.s32.totalorder %s20, 0
      %p125 = por %p123, %p124
      %p126 = scmp.ne.s32.totalorder %s114, %s115
      %p127 = scmp.eq.s32.totalorder %s21, 1
      %p128 = por %p126, %p127
      %p130 = scmp.ne.s32.totalorder %s115, %s129
      %p131 = scmp.eq.s32.totalorder %s21, 0
      %p132 = por %p130, %p131
      %s134 = sadd.s32 %s133, 1
      %p137 = scmp.eq.s32.totalorder %s15, 1
      %p138 = scmp.ne.s32.totalorder %s133, %s135
      %p139 = scmp.eq.s32.totalorder %s15, 0
      %p140 = por %p138, %p139
      %p141 = scmp.ne.s32.totalorder %s133, %s135
      %p142 = scmp.eq.s32.totalorder %s20, 1
      %p143 = por %p141, %p142
      %p144 = scmp.ne.s32.totalorder %s135, %s136
      %p145 = scmp.eq.s32.totalorder %s20, 0
      %p146 = por %p144, %p145
      %p147 = scmp.ne.s32.totalorder %s135, %s136
      %p148 = scmp.eq.s32.totalorder %s21, 1
      %p149 = por %p147, %p148
      %p151 = scmp.ne.s32.totalorder %s136, %s150
      %p152 = scmp.eq.s32.totalorder %s21, 0
      %p153 = por %p151, %p152
      %s155 = sadd.s32 %s154, 1
      %p158 = scmp.eq.s32.totalorder %s15, 1
      %p159 = scmp.ne.s32.totalorder %s154, %s156
      %p160 = scmp.eq.s32.totalorder %s15, 0
      %p161 = por %p159, %p160
      %p162 = scmp.ne.s32.totalorder %s154, %s156
      %p163 = scmp.eq.s32.totalorder %s20, 1
      %p164 = por %p162, %p163
      %p165 = scmp.ne.s32.totalorder %s156, %s157
      %p166 = scmp.eq.s32.totalorder %s20, 0
      %p167 = por %p165, %p166
      %p168 = scmp.ne.s32.totalorder %s156, %s157
      %p169 = scmp.eq.s32.totalorder %s21, 1
      %p170 = por %p168, %p169
      %p172 = scmp.ne.s32.totalorder %s157, %s171
      %p173 = scmp.eq.s32.totalorder %s21, 0
      %p174 = por %p172, %p173
      %s176 = sadd.s32 %s175, 1
      %p179 = scmp.eq.s32.totalorder %s15, 1
      %p180 = scmp.ne.s32.totalorder %s175, %s177
      %p181 = scmp.eq.s32.totalorder %s15, 0
      %p182 = por %p180, %p181
      %p183 = scmp.ne.s32.totalorder %s175, %s177
      %p184 = scmp.eq.s32.totalorder %s20, 1
      %p185 = por %p183, %p184
      %p186 = scmp.ne.s32.totalorder %s177, %s178
      %p187 = scmp.eq.s32.totalorder %s20, 0
      %p188 = por %p186, %p187
      %p189 = scmp.ne.s32.totalorder %s177, %s178
      %p190 = scmp.eq.s32.totalorder %s21, 1
      %p191 = por %p189, %p190
      %p193 = scmp.ne.s32.totalorder %s178, %s192
      %p194 = scmp.eq.s32.totalorder %s21, 0
      %p195 = por %p193, %p194
      %p196 = scmp.le.s32.totalorder 1, %s15
      %p197 = scmp.lt.s32.totalorder %s15, 3
      %p198 = pnand %p196, %p197
      %p199 = pneg %p198
      // Predicated region
      $region9: #{tpu_custom_call.1} parent=5 // pred_check
        _
      $region10: #{tpu_custom_call.1} parent=5 // pred_check_branch
        %201 = sbr.rel (%p198) target = $region12
      $region11: #{tpu_custom_call.1} parent=5 // pred_region
        %s202 = ssub.s32 %s15, 1
        // Predicated region
        $region13: #{tpu_custom_call.1} parent=11 // pred_check
          %p203 = pneg %p104
        $region14: #{tpu_custom_call.1} parent=11 // pred_check_branch
          %205 = sbr.rel (%p203) target = $region16
        $region15: #{tpu_custom_call.1} parent=11 // pred_region
          _
        $region16: #{tpu_custom_call.1} parent=11 // pred_fallthru
          _
        // Predicated region
        $region17: #{tpu_custom_call.1} parent=11 // pred_check
          %p206 = pneg %p125
        $region18: #{tpu_custom_call.1} parent=11 // pred_check_branch
          %208 = sbr.rel (%p206) target = $region20
        $region19: #{tpu_custom_call.1} parent=11 // pred_region
          _
        $region20: #{tpu_custom_call.1} parent=11 // pred_fallthru
          _
      $region12: #{tpu_custom_call.1} parent=5 // pred_fallthru
        _
      %p209 = scmp.lt.s32.totalorder %s15, 2
      // Predicated region
      $region21: #{tpu_custom_call.1} parent=5 // pred_check
        %p210 = pneg %p209
      $region22: #{tpu_custom_call.1} parent=5 // pred_check_branch
        %212 = sbr.rel (%p210) target = $region24
      $region23: #{tpu_custom_call.1} parent=5 // pred_region
        // Predicated region
        $region25: #{tpu_custom_call.1} parent=23 // pred_check
          %p213 = pneg %p49
        $region26: #{tpu_custom_call.1} parent=23 // pred_check_branch
          %215 = sbr.rel (%p213) target = $region28
        $region27: #{tpu_custom_call.1} parent=23 // pred_region
          %s216 = smul.u32 2, %s23
          %p217 = scmp.lt.s32.totalorder %s22, 1
          %s218 = scalar_select %p217, %s22, 1
          %p219 = scmp.lt.s32.totalorder %s216, 1
          %s220 = scalar_select %p219, %s216, 1
          %s221 = smul.addr %s218, 2
          %s222 = sadd.s32 %s220, %s221
          %s223 = smul.addr %s222, 8
          %s224 = scalar_lea.vmem %s0, %s223
          %s225 = smul.u32 2, %s23
        $region28: #{tpu_custom_call.1} parent=23 // pred_fallthru
          _
        // Predicated region
        $region29: #{tpu_custom_call.1} parent=23 // pred_check
          %p226 = pneg %p77
        $region30: #{tpu_custom_call.1} parent=23 // pred_check_branch
          %228 = sbr.rel (%p226) target = $region32
        $region31: #{tpu_custom_call.1} parent=23 // pred_region
          %s229 = smul.u32 2, %s23
          %p230 = scmp.lt.s32.totalorder %s22, 1
          %s231 = scalar_select %p230, %s22, 1
          %p232 = scmp.lt.s32.totalorder %s229, 1
          %s233 = scalar_select %p232, %s229, 1
          %s234 = smul.addr %s231, 2
          %s235 = sadd.s32 %s233, %s234
          %s236 = scalar_lea.vmem %s1, %s235
          %s237 = smul.u32 2, %s23
        $region32: #{tpu_custom_call.1} parent=23 // pred_fallthru
          _
      $region24: #{tpu_custom_call.1} parent=5 // pred_fallthru
        _
      %p238 = scmp.le.s32.totalorder 1, %s15
      %p239 = scmp.lt.s32.totalorder %s15, 3
      %p240 = pnand %p238, %p239
      %p241 = pneg %p240
      // Predicated region
      $region33: #{tpu_custom_call.1} parent=5 // pred_check
        _
      $region34: #{tpu_custom_call.1} parent=5 // pred_check_branch
        %243 = sbr.rel (%p240) target = $region36
      $region35: #{tpu_custom_call.1} parent=5 // pred_region
        %s244 = ssub.s32 %s15, 1
        %s245 = smul.u32 2, %s25
        %p246 = scmp.lt.s32.totalorder %s24, 1
        %s247 = scalar_select %p246, %s24, 1
        %p248 = scmp.lt.s32.totalorder %s245, 1
        %s249 = scalar_select %p248, %s245, 1
        %s250 = smul.addr %s247, 2
        %s251 = sadd.s32 %s249, %s250
        %s252 = smul.addr %s251, 8
        %s253 = scalar_lea.vmem %s0, %s252
        %p254 = pneg %p55
        %p255 = pneg %p52
        %s256 = smul.u32 2, %s25
        %p257 = scmp.lt.s32.totalorder %s24, 1
        %s258 = scalar_select %p257, %s24, 1
        %p259 = scmp.lt.s32.totalorder %s256, 1
        %s260 = scalar_select %p259, %s256, 1
        %s261 = smul.addr %s258, 2
        %s262 = sadd.s32 %s260, %s261
        %s263 = scalar_lea.vmem %s1, %s262
        %p264 = pneg %p83
        %p265 = pneg %p80
        %p266 = pneg %p104
        %p267 = pneg %p101
        %p268 = pneg %p125
        %p269 = pneg %p122
        %p270 = pneg %p146
        %p271 = pneg %p143
        %p272 = pneg %p167
        %p273 = pneg %p164
        %p274 = pneg %p188
        %p275 = pneg %p185
        %s276 = smul.u32 2, %s25
        %p277 = scmp.lt.s32.totalorder %s24, 1
        %s278 = scalar_select %p277, %s24, 1
        %p279 = scmp.lt.s32.totalorder %s276, 1
        %s280 = scalar_select %p279, %s276, 1
        %s281 = smul.addr %s278, 2
        %s282 = sadd.s32 %s280, %s281
        %s283 = smul.addr %s282, 8
        %s284 = scalar_lea.vmem %s0, %s283
        %s285 = smul.u32 2, %s25
        %s286 = smul.u32 2, %s25
        %p287 = scmp.lt.s32.totalorder %s24, 1
        %s288 = scalar_select %p287, %s24, 1
        %p289 = scmp.lt.s32.totalorder %s286, 1
        %s290 = scalar_select %p289, %s286, 1
        %s291 = smul.addr %s288, 2
        %s292 = sadd.s32 %s290, %s291
        %s293 = scalar_lea.vmem %s1, %s292
        %s294 = smul.u32 2, %s25
        %p295 = scmp.eq.s32.totalorder %s24, 0
        %p296 = scmp.eq.s32.totalorder %s25, 0
        %p297 = pnand %p295, %p296
        %p298 = pneg %p297
        %p299 = scmp.eq.s32.totalorder %s24, 1
        %p300 = pnand %p299, %p296
        %p301 = pneg %p300
        // Predicated region
        $region37: #{tpu_custom_call.1} parent=35 // pred_check
          _
        $region38: #{tpu_custom_call.1} parent=35 // pred_check_branch
          %303 = sbr.rel (%p297) target = $region40
        $region39: #{tpu_custom_call.1} parent=35 // pred_region
          %v304 = vlaneseq
          %vm305 = vcmp.ge.s32.totalorder %v304, 0
          %vm306 = vcmp.lt.s32.totalorder %v304, 256
          %vm307 = vmand %vm305, %vm306
          %308 = vst.msk [vmem:[#allocation2] sm:$0x3] %vm307, 0.0
          %v309 = vld [vmem:[%s2] sm:$0xff]
          %v310 = vld [vmem:[%s2 + $0x8] sm:$0xff]
          %v311 = vld [vmem:[%s2 + $0x10] sm:$0xff]
          %v312 = vld [vmem:[%s2 + $0x18] sm:$0xff]
          %v313 = vsub.f32 %v309, 1.0
          %v314 = vsub.f32 %v310, 1.0
          %v315 = vsub.f32 %v311, 1.0
          %v316 = vsub.f32 %v312, 1.0
          %v317 = vmin.f32 %v313, 0.0
          %v318 = vmin.f32 %v314, 0.0
          %v319 = vmin.f32 %v315, 0.0
          %v320 = vmin.f32 %v316, 0.0
          %vm321 = vcmask 130048
          %v322 = vsel %vm321, %v317, 0.0
          %v323 = vsel %vm321, %v318, 0.0
          %v324 = vadd.f32 %v322, %v323
          %v325 = vsel %vm321, %v319, 0.0
          %v326 = vadd.f32 %v324, %v325
          %v327 = vsel %vm321, %v320, 0.0
          %v328 = vadd.f32 %v326, %v327
          %329 = vadd.xlane.f32.xlu0 %v328
          %v330 = vpop.xlane.xlu0 %329
          %v331 = vrot.slane %v330, 4
          %v332 = vadd.f32 %v330, %v331
          %v333 = vrot.slane %v332, 2
          %v334 = vadd.f32 %v332, %v333
          %v335 = vrot.slane %v334, 1
          %v336 = vadd.f32 %v334, %v335
          %s337 = vtos %v336
          %v338 = vstv %s337
          %vm339 = vcmask 0
          %340 = vst.msk [vmem:[#allocation5] sm:$0x1] %vm339, %v338
          %v341 = vld [vmem:[%s3] sm:$0xff]
          %v342 = vld [vmem:[%s3 + $0x8] sm:$0xff]
          %v343 = vsub.f32 %v341, 1.0
          %v344 = vsub.f32 %v342, 1.0
          %v345 = vmin.f32 %v343, 0.0
          %v346 = vmin.f32 %v344, 0.0
          %vm347 = vcmask 64512
          %v348 = vsel %vm347, %v345, 0.0
          %v349 = vsel %vm347, %v346, 0.0
          %v350 = vadd.f32 %v348, %v349
          %351 = vadd.xlane.f32.xlu0 %v350
          %v352 = vpop.xlane.xlu0 %351
          %v353 = vrot.slane %v352, 4
          %v354 = vadd.f32 %v352, %v353
          %v355 = vrot.slane %v354, 2
          %v356 = vadd.f32 %v354, %v355
          %v357 = vrot.slane %v356, 1
          %v358 = vadd.f32 %v356, %v357
          %s359 = vtos %v358
          %v360 = vstv %s359
          %361 = vst.msk [vmem:[#allocation7] sm:$0x1] %vm339, %v360
        $region40: #{tpu_custom_call.1} parent=35 // pred_fallthru
          _
        %v362 = vld [vmem:[%s284] sm:$0xff]
        %v363 = vld [vmem:[%s284 + $0x8] sm:$0xff]
        %v364 = vld [vmem:[%s293] sm:$0x3]
        %v365 = vrot.slane %v362, 4
        %v366 = vmax.f32 %v362, %v365
        %v367 = vrot.slane %v366, 2
        %v368 = vmax.f32 %v366, %v367
        %v369 = vrot.slane %v368, 1
        %v370 = vmax.f32 %v368, %v369
        %v371 = vrot.slane %v363, 4
        %v372 = vmax.f32 %v363, %v371
        %v373 = vrot.slane %v372, 2
        %v374 = vmax.f32 %v372, %v373
        %v375 = vrot.slane %v374, 1
        %v376 = vmax.f32 %v374, %v375
        %v377 = vsub.f32 %v362, %v370
        %v378 = vsub.f32 %v363, %v376
        %v379 = vmul.f32 %v377, 1.442695
        %v380 = vpow.pop %v379
        %v381 = vmul.f32 %v378, 1.442695
        %v382 = vpow.pop %v381
        %v383 = vrot.slane %v380, 4
        %v384 = vadd.f32 %v380, %v383
        %v385 = vrot.slane %v384, 2
        %v386 = vadd.f32 %v384, %v385
        %v387 = vrot.slane %v386, 1
        %v388 = vadd.f32 %v386, %v387
        %v389 = vrot.slane %v382, 4
        %v390 = vadd.f32 %v382, %v389
        %v391 = vrot.slane %v390, 2
        %v392 = vadd.f32 %v390, %v391
        %v393 = vrot.slane %v392, 1
        %v394 = vadd.f32 %v392, %v393
        %v395 = vlog2.pop %v388
        %v396 = vmul.f32 %v395, 0.6931472
        %v397 = vlog2.pop %v394
        %v398 = vmul.f32 %v397, 0.6931472
        %v399 = vadd.f32 %v396, %v370
        %v400 = vadd.f32 %v398, %v376
        %v401 = vlaneseq
        %v402 = vshrl.u32 %v401, 7
        %v403 = vlaneseq
        %v404 = vshrl.u32 %v403, 7
        %v405 = vsub.s32 0, %v404
        %v406 = vrot.slane %v364, %v405
        %v407 = vlaneseq
        %v408 = vshrl.u32 %v407, 7
        %v409 = vsub.s32 1, %v408
        %v410 = vrot.slane %v364, %v409
        %vm411 = vcmp.eq.s32.totalorder %v402, %v406
        %vm412 = vcmp.eq.s32.totalorder %v402, %v410
        %v413 = vsel %vm411, %v362, 0.0
        %v414 = vsel %vm412, %v363, 0.0
        %v415 = vrot.slane %v413, 4
        %v416 = vadd.f32 %v413, %v415
        %v417 = vrot.slane %v416, 2
        %v418 = vadd.f32 %v416, %v417
        %v419 = vrot.slane %v418, 1
        %v420 = vadd.f32 %v418, %v419
        %v421 = vrot.slane %v414, 4
        %v422 = vadd.f32 %v414, %v421
        %v423 = vrot.slane %v422, 2
        %v424 = vadd.f32 %v422, %v423
        %v425 = vrot.slane %v424, 1
        %v426 = vadd.f32 %v424, %v425
        %vm427 = vcmp.ne.s32.totalorder %v364, 19
        %v428 = vld [vmem:[#allocation2] sm:$0x3]
        %v429 = vsub.f32 %v399, %v420
        %v430 = vsub.f32 %v400, %v426
        %v433 = vcombine.low %v429, %v430
        %v435 = vunpack.c.l.s4 1966171168
        %v436 = vunpack.c.0.s8 %v435
        %v437 = vlaneseq
        %v438 = vshrl.u32 %v437, 7
        %v439 = vsub.s32 %v436, %v438
        %v440 = vrot.slane %v433, %v439
        %v442 = vunpack.c.l.s4 1966171168
        %v443 = vunpack.c.0.s8 %v442
        %v444 = vlaneseq
        %v445 = vshrl.u32 %v444, 7
        %v446 = vsub.s32 %v443, %v445
        %v447 = vrot.slane %v440, %v446
        %v449 = vsel %vm427, %v447, 0.0
        %v450 = vadd.f32 %v428, %v449
        %v451 = vlaneseq
        %vm452 = vcmp.ge.s32.totalorder %v451, 0
        %vm453 = vcmp.lt.s32.totalorder %v451, 256
        %vm454 = vmand %vm452, %vm453
        %455 = vst.msk [vmem:[#allocation2] sm:$0x3] %vm454, %v450
        // Predicated region
        $region41: #{tpu_custom_call.1} parent=35 // pred_check
          _
        $region42: #{tpu_custom_call.1} parent=35 // pred_check_branch
          %457 = sbr.rel (%p300) target = $region44
        $region43: #{tpu_custom_call.1} parent=35 // pred_region
          %v458 = vld [vmem:[#allocation2] sm:$0x3]
          %v460 = vlaneseq
          %v461 = vshrl.u32 %v460, 7
          %v462 = vsub.s32 0, %v461
          %v463 = vrot.slane %v458, %v462
          %v464 = vlaneseq
          %v465 = vshrl.u32 %v464, 7
          %v466 = vsub.s32 1, %v465
          %v467 = vrot.slane %v458, %v466
          %vm470 = vcmask 1040384
          %v471 = vsel %vm470, %v463, 0.0
          %v472 = vsel %vm470, %v467, 0.0
          %v473 = vadd.f32 %v471, %v472
          %474 = vadd.xlane.f32.xlu0 %v473
          %v475 = vpop.xlane.xlu0 %474
          %v476 = vrot.slane %v475, 4
          %v477 = vadd.f32 %v475, %v476
          %v478 = vrot.slane %v477, 2
          %v479 = vadd.f32 %v477, %v478
          %v480 = vrot.slane %v479, 1
          %v481 = vadd.f32 %v479, %v480
          %s482 = vtos %v481
          %v483 = vstv %s482
          %vm484 = vcmask 0
          %485 = vst.msk [vmem:[#allocation3] sm:$0x1] %vm484, %v483
        $region44: #{tpu_custom_call.1} parent=35 // pred_fallthru
          _
        // Predicated region
        $region45: #{tpu_custom_call.1} parent=35 // pred_check
          %p486 = pneg %p143
        $region46: #{tpu_custom_call.1} parent=35 // pred_check_branch
          %488 = sbr.rel (%p486) target = $region48
        $region47: #{tpu_custom_call.1} parent=35 // pred_region
          %s490 = ssub.s32 16, 16
          %491 = vsyncadd [#allocation4], %s490
          %s493 = sshll.u32 [#allocation3], 4
          %s494 = int_to_ptr.vmem [resolvable:$true] %s493
          %496 = dma.vmem_to_hbm [thread:$0]  %s494, 16, %s4, [#allocation4]
        $region48: #{tpu_custom_call.1} parent=35 // pred_fallthru
          _
        // Predicated region
        $region49: #{tpu_custom_call.1} parent=35 // pred_check
          %p497 = pneg %p164
        $region50: #{tpu_custom_call.1} parent=35 // pred_check_branch
          %499 = sbr.rel (%p497) target = $region52
        $region51: #{tpu_custom_call.1} parent=35 // pred_region
          %s501 = ssub.s32 16, 16
          %502 = vsyncadd [#allocation6], %s501
          %s504 = sshll.u32 [#allocation5], 4
          %s505 = int_to_ptr.vmem [resolvable:$true] %s504
          %507 = dma.vmem_to_hbm [thread:$0]  %s505, 16, %s5, [#allocation6]
        $region52: #{tpu_custom_call.1} parent=35 // pred_fallthru
          _
        // Predicated region
        $region53: #{tpu_custom_call.1} parent=35 // pred_check
          %p508 = pneg %p185
        $region54: #{tpu_custom_call.1} parent=35 // pred_check_branch
          %510 = sbr.rel (%p508) target = $region56
        $region55: #{tpu_custom_call.1} parent=35 // pred_region
          %s512 = ssub.s32 16, 16
          %513 = vsyncadd [#allocation6], %s512
          %s515 = sshll.u32 [#allocation7], 4
          %s516 = int_to_ptr.vmem [resolvable:$true] %s515
          %518 = dma.vmem_to_hbm [thread:$0]  %s516, 16, %s6, [#allocation6]
        $region56: #{tpu_custom_call.1} parent=35 // pred_fallthru
          _
        // Predicated region
        $region57: #{tpu_custom_call.1} parent=35 // pred_check
          %p519 = pneg %p143
        $region58: #{tpu_custom_call.1} parent=35 // pred_check_branch
          %521 = sbr.rel (%p519) target = $region60
        $region59: #{tpu_custom_call.1} parent=35 // pred_region
          %522 = dma.done [#allocation4], 16
        $region60: #{tpu_custom_call.1} parent=35 // pred_fallthru
          _
        // Predicated region
        $region61: #{tpu_custom_call.1} parent=35 // pred_check
          %p523 = pneg %p164
        $region62: #{tpu_custom_call.1} parent=35 // pred_check_branch
          %525 = sbr.rel (%p523) target = $region64
        $region63: #{tpu_custom_call.1} parent=35 // pred_region
          %526 = dma.done [#allocation6], 16
        $region64: #{tpu_custom_call.1} parent=35 // pred_fallthru
          _
        // Predicated region
        $region65: #{tpu_custom_call.1} parent=35 // pred_check
          %p527 = pneg %p185
        $region66: #{tpu_custom_call.1} parent=35 // pred_check_branch
          %529 = sbr.rel (%p527) target = $region68
        $region67: #{tpu_custom_call.1} parent=35 // pred_region
          %530 = dma.done [#allocation6], 16
        $region68: #{tpu_custom_call.1} parent=35 // pred_fallthru
          _
      $region36: #{tpu_custom_call.1} parent=5 // pred_fallthru
        _
      %p531 = scmp.le.s32.totalorder 2, %s15
      // Predicated region
      $region69: #{tpu_custom_call.1} parent=5 // pred_check
        %p532 = pneg %p531
      $region70: #{tpu_custom_call.1} parent=5 // pred_check_branch
        %534 = sbr.rel (%p532) target = $region72
      $region71: #{tpu_custom_call.1} parent=5 // pred_region
        %s535 = ssub.s32 %s15, 2
      $region72: #{tpu_custom_call.1} parent=5 // pred_fallthru
        _
    $region6: #{tpu_custom_call.1} parent=1 // loop_footer
      %s19 = sadd.s32 1, %s15
    $region7: #{tpu_custom_call.1} parent=1 // loop_footer_branch
      %14 = sbr.rel target = $region3
    $region8: #{tpu_custom_call.1} parent=1 // loop_exit
      _
    %536 = vsyncpa [#allocation4], 1
    %s537 = scalar_lea.sflag [#allocation4], 1
    %538 = vsyncpa %s537, 1
    %539 = vsyncpa [#allocation6], 1

</llo_original>
